<compile_context>
chip_gen: v6e
topology: v6e:2x2x1
jax: 0.10.0
libtpu: 0.0.40
codegen_flags: <defaults>
</compile_context>

<pallas_src>
import functools

import jax
import jax.numpy as jnp
from jax.experimental import pallas as pl
from jax.experimental.pallas import tpu as pltpu


def _round_up(x, m):
    return ((x + m - 1) // m) * m


def _gather_logits(idx, emb):
    """Exact embedding lookup as one-hot @ table (MXU, f32-exact)."""
    tm = idx.shape[0]
    vpad = emb.shape[0]
    col = jax.lax.broadcasted_iota(jnp.int32, (tm, vpad), 1)
    onehot = (col == idx).astype(jnp.float32)                     # (tm, vpad)
    return jnp.dot(onehot, emb,
                   preferred_element_type=jnp.float32,
                   precision=jax.lax.Precision.HIGHEST)           # (tm, V)


def _row_losses(logits, tgt, pid, tm, n_total):
    """Per-row cross-entropy contributions, masked for out-of-range rows."""
    v = logits.shape[1]
    m = jnp.max(logits, axis=-1, keepdims=True)
    lse = m + jnp.log(jnp.sum(jnp.exp(logits - m), axis=-1, keepdims=True))
    colv = jax.lax.broadcasted_iota(jnp.int32, (tm, v), 1)
    picked = jnp.sum(jnp.where(colv == tgt, logits, 0.0), axis=-1, keepdims=True)
    row = jax.lax.broadcasted_iota(jnp.int32, (tm, 1), 0)
    valid = (pid * tm + row) < n_total
    return jnp.where(valid, lse - picked, 0.0)


def _bigram_logits_kernel(idx_ref, emb_ref, logits_ref):
    # idx_ref : (tm, 1)    int32
    # emb_ref : (Vpad, V)  f32 (resident)
    # logits  : (tm, V)    f32
    logits_ref[...] = _gather_logits(idx_ref[...], emb_ref[...])


def _bigram_loss_kernel(ids_ref, emb_ref, logits_ref, row_loss_ref, *, n_total):
    # ids_ref      : (tm, 2)   int32  [idx | target]  (fused input stream)
    # emb_ref      : (Vpad, V) f32    (resident)
    # logits_ref   : (tm, V)   f32
    # row_loss_ref : (tm, 1)   f32    per-row loss contributions
    pid = pl.program_id(0)
    tm = ids_ref.shape[0]
    ids = ids_ref[...]
    idx = ids[:, 0:1]
    tgt = ids[:, 1:2]
    logits = _gather_logits(idx, emb_ref[...])
    logits_ref[...] = logits
    row_loss_ref[...] = _row_losses(logits, tgt, pid, tm, n_total)


def _bigram_loss_only_kernel(ids_ref, emb_ref, row_loss_ref, *, n_total):
    # Loss-only variant: no logits writeback at all.
    pid = pl.program_id(0)
    tm = ids_ref.shape[0]
    ids = ids_ref[...]
    idx = ids[:, 0:1]
    tgt = ids[:, 1:2]
    logits = _gather_logits(idx, emb_ref[...])
    row_loss_ref[...] = _row_losses(logits, tgt, pid, tm, n_total)


def bigram_forward(emb_table, idx, targets=None, *, tm=2048, return_logits=True):
    """Pallas equivalent of BigramLanguageModel.forward.

    emb_table: (V, V) float32
    idx:       (B, T) integer
    targets:   (B, T) integer or None
    Returns (logits, loss) matching PyTorch semantics:
      targets is None           -> logits (B, T, V), loss None
      targets given             -> logits (B*T, V),  loss scalar
      targets given, return_logits=False -> (None, loss scalar)
    """
    B, T = idx.shape
    V = emb_table.shape[0]
    N = B * T

    # Row tile: multiple of 8, no bigger than the (8-rounded) problem size.
    tm = _round_up(max(int(tm), 8), 8)
    tm = min(tm, _round_up(N, 8))
    grid = (pl.cdiv(N, tm),)

    # Embedding table: rows padded to 128 for an aligned MXU contraction dim.
    # Pad rows are all-zero and never selected (idx < V); columns are exactly V
    # so the logits output needs no post-slicing.
    vpad = _round_up(V, 128)
    emb_pad = jnp.zeros((vpad, V), jnp.float32).at[:V, :].set(
        emb_table.astype(jnp.float32))

    emb_spec = pl.BlockSpec((vpad, V), lambda i: (0, 0))        # resident block
    logits_spec = pl.BlockSpec((tm, V), lambda i: (i, 0))
    row_loss_spec = pl.BlockSpec((tm, 1), lambda i: (i, 0))
    # Note: if per-generation profiling (v6e) shows writeback bubbles between
    # grid steps, add pipeline_mode=pl.Buffered(3) to logits_spec.

    cparams = pltpu.CompilerParams(dimension_semantics=("parallel",))

    if targets is None:
        idx_flat = idx.reshape(N, 1).astype(jnp.int32)
        logits = pl.pallas_call(
            _bigram_logits_kernel,
            out_shape=jax.ShapeDtypeStruct((N, V), jnp.float32),
            grid=grid,
            in_specs=[pl.BlockSpec((tm, 1), lambda i: (i, 0)), emb_spec],
            out_specs=logits_spec,
            compiler_params=cparams,
        )(idx_flat, emb_pad)
        return logits.reshape(B, T, V), None

    # Fused [idx | target] int32 stream: one small input DMA per step.
    ids = jnp.stack(
        [idx.reshape(-1).astype(jnp.int32), targets.reshape(-1).astype(jnp.int32)],
        axis=-1)                                                  # (N, 2)
    ids_spec = pl.BlockSpec((tm, 2), lambda i: (i, 0))

    if return_logits:
        logits, row_loss = pl.pallas_call(
            functools.partial(_bigram_loss_kernel, n_total=N),
            out_shape=(
                jax.ShapeDtypeStruct((N, V), jnp.float32),
                jax.ShapeDtypeStruct((N, 1), jnp.float32),
            ),
            grid=grid,
            in_specs=[ids_spec, emb_spec],
            out_specs=(logits_spec, row_loss_spec),
            compiler_params=cparams,
        )(ids, emb_pad)
        loss = jnp.sum(row_loss) / N
        return logits, loss

    row_loss = pl.pallas_call(
        functools.partial(_bigram_loss_only_kernel, n_total=N),
        out_shape=jax.ShapeDtypeStruct((N, 1), jnp.float32),
        grid=grid,
        in_specs=[ids_spec, emb_spec],
        out_specs=row_loss_spec,
        compiler_params=cparams,
    )(ids, emb_pad)
    loss = jnp.sum(row_loss) / N
    return None, loss


def _ref_forward(emb_table, idx, targets):
    # Pure-JAX reference (embedding gather + cross-entropy).
    logits = emb_table[idx.reshape(-1)]
    lse = jax.nn.logsumexp(logits, axis=-1)
    picked = jnp.take_along_axis(logits, targets.reshape(-1, 1), axis=-1)[:, 0]
    return logits, jnp.mean(lse - picked)


if __name__ == "__main__":
    # Shakespeare-char vocab is 65; nn.Embedding default init is N(0, 1).
    vocab_size = 65
    B, T = 2, 8

    key = jax.random.PRNGKey(0)
    k_emb, k_idx, k_tgt = jax.random.split(key, 3)
    emb_table = jax.random.normal(k_emb, (vocab_size, vocab_size), dtype=jnp.float32)
    idx = jax.random.randint(k_idx, (B, T), 0, vocab_size, dtype=jnp.int32)
    targets = jax.random.randint(k_tgt, (B, T), 0, vocab_size, dtype=jnp.int32)

    ref_logits, ref_loss = _ref_forward(emb_table, idx, targets)

    # Loss + logits path.
    logits, loss = bigram_forward(emb_table, idx, targets)
    logits = jax.block_until_ready(logits)
    loss = jax.block_until_ready(loss)
    assert logits.shape == (B * T, vocab_size)
    assert jnp.allclose(logits, ref_logits, atol=1e-5), "logits mismatch"
    assert jnp.allclose(loss, ref_loss, atol=1e-5), "loss mismatch"

    # Loss-only path (no logits writeback).
    none_logits, loss_only = bigram_forward(emb_table, idx, targets,
                                            return_logits=False)
    loss_only = jax.block_until_ready(loss_only)
    assert none_logits is None
    assert jnp.allclose(loss_only, ref_loss, atol=1e-5), "loss-only mismatch"

    # Logits-only path (targets=None -> (B, T, C), loss None).
    logits3d, loss_none = bigram_forward(emb_table, idx, None)
    jax.block_until_ready(logits3d)
    assert logits3d.shape == (B, T, vocab_size) and loss_none is None
    assert jnp.allclose(logits3d.reshape(-1, vocab_size), ref_logits, atol=1e-5)

    # Exercise the multi-step grid with a ragged last tile (N=14, tm=8 -> grid=2).
    B2, T2 = 2, 7
    idx2 = jax.random.randint(k_idx, (B2, T2), 0, vocab_size, dtype=jnp.int32)
    tgt2 = jax.random.randint(k_tgt, (B2, T2), 0, vocab_size, dtype=jnp.int32)
    logits2, loss2 = bigram_forward(emb_table, idx2, tgt2, tm=8)
    jax.block_until_ready(loss2)
    ref_logits2, ref_loss2 = _ref_forward(emb_table, idx2, tgt2)
    assert logits2.shape == (B2 * T2, vocab_size)
    assert jnp.allclose(logits2, ref_logits2, atol=1e-5), "tiled logits mismatch"
    assert jnp.allclose(loss2, ref_loss2, atol=1e-5), "tiled loss mismatch"

    # Non-multiple-of-8 user tile must be rounded, not rejected.
    logits3, loss3 = bigram_forward(emb_table, idx2, tgt2, tm=500)
    jax.block_until_ready(loss3)
    assert jnp.allclose(loss3, ref_loss2, atol=1e-5), "rounded-tm loss mismatch"

    print("KERNEL_OK")
</pallas_src>

<mosaic_0001>
module attributes {stable_mosaic.version = 11 : i64} {
  func.func @_bigram_loss_kernel(%arg0: i32, %arg1: memref<16x2xi32, #tpu.memory_space<vmem>>, %arg2: memref<128x65xf32, #tpu.memory_space<vmem>>, %arg3: memref<16x65xf32, #tpu.memory_space<vmem>>, %arg4: memref<16x1xf32, #tpu.memory_space<vmem>>) attributes {dimension_semantics = [#tpu.dimension_semantics<parallel>], iteration_bounds = array<i64: 1>, scalar_prefetch = 0 : i64, scratch_operands = 0 : i64, tpu.core_type = #tpu.core_type<tc>, window_params = [{transform_indices = @transform_0, window_bounds = array<i64: 16, 2>}, {pipeline_mode = #tpu.pipeline_mode<synchronous>, transform_indices = @transform_1, window_bounds = array<i64: 128, 65>}, {transform_indices = @transform_2, window_bounds = array<i64: 16, 65>}, {transform_indices = @transform_3, window_bounds = array<i64: 16, 1>}]} {
    %c0 = arith.constant 0 : index
    %c0_0 = arith.constant 0 : index
    %0 = vector.load %arg1[%c0, %c0_0] : memref<16x2xi32, #tpu.memory_space<vmem>>, vector<16x2xi32>
    %1 = vector.extract_strided_slice %0 {offsets = [0, 0], sizes = [16, 1], strides = [1, 1]} : vector<16x2xi32> to vector<16x1xi32>
    %2 = vector.extract_strided_slice %0 {offsets = [0, 1], sizes = [16, 1], strides = [1, 1]} : vector<16x2xi32> to vector<16x1xi32>
    %c0_1 = arith.constant 0 : index
    %c0_2 = arith.constant 0 : index
    %3 = vector.load %arg2[%c0_1, %c0_2] : memref<128x65xf32, #tpu.memory_space<vmem>>, vector<128x65xf32>
    %4 = tpu.iota {dimensions = array<i32: 1>} : vector<16x128xi32>
    %5 = vector.broadcast %1 : vector<16x1xi32> to vector<16x128xi32>
    %6 = arith.cmpi eq, %4, %5 : vector<16x128xi32>
    %7 = arith.extui %6 : vector<16x128xi1> to vector<16x128xi32>
    %8 = arith.sitofp %7 : vector<16x128xi32> to vector<16x128xf32>
    %cst = arith.constant dense<0.000000e+00> : vector<16x65xf32>
    %9 = tpu.matmul %8, %3, %cst {dimension_numbers = #tpu.dot_dimension_numbers<[1], [0], [0], [1], [0, 0, 1, 1], [], []>, precision = #tpu.contract_precision<fp32>} : vector<16x128xf32>, vector<128x65xf32>, vector<16x65xf32> -> vector<16x65xf32>
    %c0_3 = arith.constant 0 : index
    %c0_4 = arith.constant 0 : index
    %10 = vector.load %arg3[%c0_3, %c0_4] : memref<16x65xf32, #tpu.memory_space<vmem>>, vector<16x65xf32>
    tpu.vector_store %arg3[%c0_3, %c0_4], %9 {strides = array<i32>} : memref<16x65xf32, #tpu.memory_space<vmem>>, vector<16x65xf32>,
    %cst_5 = arith.constant dense<0xFF800000> : vector<16xf32>
    %11 = vector.multi_reduction <maximumf>, %9, %cst_5 [1] : vector<16x65xf32> to vector<16xf32>
    %12 = vector.shape_cast %11 : vector<16xf32> to vector<16x1xf32>
    %13 = vector.broadcast %12 : vector<16x1xf32> to vector<16x65xf32>
    %14 = arith.subf %9, %13 : vector<16x65xf32>
    %15 = math.exp %14 : vector<16x65xf32>
    %cst_6 = arith.constant dense<0.000000e+00> : vector<16xf32>
    %16 = vector.multi_reduction <add>, %15, %cst_6 [1] : vector<16x65xf32> to vector<16xf32>
    %17 = vector.shape_cast %16 : vector<16xf32> to vector<16x1xf32>
    %18 = math.log %17 : vector<16x1xf32>
    %19 = arith.addf %12, %18 : vector<16x1xf32>
    %20 = tpu.iota {dimensions = array<i32: 1>} : vector<16x65xi32>
    %21 = vector.broadcast %2 : vector<16x1xi32> to vector<16x65xi32>
    %22 = arith.cmpi eq, %20, %21 : vector<16x65xi32>
    %cst_7 = arith.constant 0.000000e+00 : f32
    %23 = vector.broadcast %cst_7 : f32 to vector<16x65xf32>
    %24 = arith.select %22, %9, %23 : vector<16x65xi1>, vector<16x65xf32>
    %cst_8 = arith.constant dense<0.000000e+00> : vector<16xf32>
    %25 = vector.multi_reduction <add>, %24, %cst_8 [1] : vector<16x65xf32> to vector<16xf32>
    %26 = vector.shape_cast %25 : vector<16xf32> to vector<16x1xf32>
    %27 = tpu.iota {dimensions = array<i32: 0>} : vector<16x1xi32>
    %c16_i32 = arith.constant 16 : i32
    %28 = arith.muli %arg0, %c16_i32 : i32
    %29 = vector.broadcast %28 : i32 to vector<16x1xi32>
    %30 = arith.addi %29, %27 : vector<16x1xi32>
    %c16_i32_9 = arith.constant 16 : i32
    %31 = vector.broadcast %c16_i32_9 : i32 to vector<16x1xi32>
    %32 = arith.cmpi slt, %30, %31 : vector<16x1xi32>
    %33 = arith.subf %19, %26 : vector<16x1xf32>
    %cst_10 = arith.constant 0.000000e+00 : f32
    %34 = vector.broadcast %cst_10 : f32 to vector<16x1xf32>
    %35 = arith.select %32, %33, %34 : vector<16x1xi1>, vector<16x1xf32>
    %c0_11 = arith.constant 0 : index
    %c0_12 = arith.constant 0 : index
    %36 = vector.load %arg4[%c0_11, %c0_12] : memref<16x1xf32, #tpu.memory_space<vmem>>, vector<16x1xf32>
    tpu.vector_store %arg4[%c0_11, %c0_12], %35 {strides = array<i32>} : memref<16x1xf32, #tpu.memory_space<vmem>>, vector<16x1xf32>,
    return
  }
  func.func @transform_0(%arg0: i32) -> (i32, i32) {
    %c0_i32 = arith.constant 0 : i32
    %c0_i32_0 = arith.constant 0 : i32
    return %arg0, %c0_i32 : i32, i32
  }
  func.func @transform_1(%arg0: i32) -> (i32, i32) {
    %c0_i32 = arith.constant 0 : i32
    %c0_i32_0 = arith.constant 0 : i32
    %c0_i32_1 = arith.constant 0 : i32
    return %c0_i32, %c0_i32_0 : i32, i32
  }
  func.func @transform_2(%arg0: i32) -> (i32, i32) {
    %c0_i32 = arith.constant 0 : i32
    %c0_i32_0 = arith.constant 0 : i32
    return %arg0, %c0_i32 : i32, i32
  }
  func.func @transform_3(%arg0: i32) -> (i32, i32) {
    %c0_i32 = arith.constant 0 : i32
    %c0_i32_0 = arith.constant 0 : i32
    return %arg0, %c0_i32 : i32, i32
  }
}

</mosaic_0001>

<llo_original>
// kernel: tpu_custom_call.1
$region0: #{tpu_custom_call.1}
  #allocation0 [shape = 'u32[]', space=smem, size = 0x4, offset = 0x4, fixed_abs, tag = 'smem constant byte address 0x4 - core index']
  #allocation1 [shape = 'u32[144,128]{1,0:T(1,128)}', space=vmem, size = 0x12000, scoped, tag = 'internal scratch']
  %s0 = inlined_call_operand.vmem [shape: s32[16,2], index: 0, kind: input, shape index: {}]
  %s1 = inlined_call_operand.vmem [shape: f32[128,65], index: 1, kind: input, shape index: {}]
  %s2 = inlined_call_operand.hbm [shape: f32[16,65], index: 2, kind: output, shape index: {0}]
  %s3 = inlined_call_operand.vmem [shape: f32[16,1], index: 3, kind: output, shape index: {1}]
  %4 = xla_tuple %s2, %s3
  %s5 = sld [smem:[#allocation0]]
  $region26: #{tpu_custom_call.1} parent=0
    _
  %s7 = ssub.s32 1, %s5
  %s8 = scalar_select 0, %s7, %s5
  $region1: #{tpu_custom_call.1} parent=0
    #allocation2 [shape = 'u8[8192]{0}', space=vmem, size = 0x2000, scoped, tag = 'output window, operand 0, single buffered']
    #allocation3 [shape = 's32[1]{0}', space=sflag, size = 0x4, scoped, tag = 'scoped memory for tpu_custom_call.1']
    %9 = vsyncpa [#allocation3], 0
    // Predicated region
    $region2: #{tpu_custom_call.1} parent=1 // pred_check
      _
    $region3: #{tpu_custom_call.1} parent=1 // pred_check_branch
      %11 = sbr.rel (0) target = $region5
    $region4: #{tpu_custom_call.1} parent=1 // pred_region
      _
    $region5: #{tpu_custom_call.1} parent=1 // pred_fallthru
      _
    // Predicated region
    $region6: #{tpu_custom_call.1} parent=1 // pred_check
      _
    $region7: #{tpu_custom_call.1} parent=1 // pred_check_branch
      %13 = sbr.rel (0) target = $region9
    $region8: #{tpu_custom_call.1} parent=1 // pred_region
      _
    $region9: #{tpu_custom_call.1} parent=1 // pred_fallthru
      _
    %v14 = vld [vmem:[%s0] sm:$0xff]
    %v15 = vld [vmem:[%s0 + $0x8] sm:$0xff]
    %v16 = vld [vmem:[%s1] sm:$0xff]
    %v17 = vld [vmem:[%s1 + $0x8] sm:$0xff]
    %v18 = vld [vmem:[%s1 + $0x10] sm:$0xff]
    %v19 = vld [vmem:[%s1 + $0x18] sm:$0xff]
    %v20 = vld [vmem:[%s1 + $0x20] sm:$0xff]
    %v21 = vld [vmem:[%s1 + $0x28] sm:$0xff]
    %v22 = vld [vmem:[%s1 + $0x30] sm:$0xff]
    %v23 = vld [vmem:[%s1 + $0x38] sm:$0xff]
    %v24 = vld [vmem:[%s1 + $0x40] sm:$0xff]
    %v25 = vld [vmem:[%s1 + $0x48] sm:$0xff]
    %v26 = vld [vmem:[%s1 + $0x50] sm:$0xff]
    %v27 = vld [vmem:[%s1 + $0x58] sm:$0xff]
    %v28 = vld [vmem:[%s1 + $0x60] sm:$0xff]
    %v29 = vld [vmem:[%s1 + $0x68] sm:$0xff]
    %v30 = vld [vmem:[%s1 + $0x70] sm:$0xff]
    %v31 = vld [vmem:[%s1 + $0x78] sm:$0xff]
    %v32 = vlaneseq
    %v33 = vand.u32 %v32, 127
    %34 = vset.pattern.permute.xlu0 0
    %35 = vperm.xlu0 %34, %v14
    %v36 = vpop.permute.xlu0 %35
    %37 = vset.pattern.permute.xlu0 0
    %38 = vperm.xlu0 %37, %v15
    %v39 = vpop.permute.xlu0 %38
    %vm40 = vcmp.eq.s32.totalorder %v33, %v36
    %vm41 = vcmp.eq.s32.totalorder %v33, %v39
    %v42 = vsel %vm40, 1, 0
    %v43 = vsel %vm41, 1, 0
    %v44 = vcvt.s32.f32 %v42
    %v45 = vcvt.s32.f32 %v43
    %46 = vmatprep.subr.mxu0 0.0
    %v47 = vand.u32 %v31, 4294901760
    %48 = vmatpush1.msra.mxu0 %v47
    %49 = vmatprep.subr.mxu0 0.0
    %v50 = vand.u32 %v30, 4294901760
    %51 = vmatpush1.msra.mxu0 %v50
    %52 = vmatprep.subr.mxu0 0.0
    %v53 = vand.u32 %v29, 4294901760
    %54 = vmatpush1.msra.mxu0 %v53
    %55 = vmatprep.subr.mxu0 0.0
    %v56 = vand.u32 %v28, 4294901760
    %57 = vmatpush1.msra.mxu0 %v56
    %58 = vmatprep.subr.mxu0 0.0
    %v59 = vand.u32 %v27, 4294901760
    %60 = vmatpush1.msra.mxu0 %v59
    %61 = vmatprep.subr.mxu0 0.0
    %v62 = vand.u32 %v26, 4294901760
    %63 = vmatpush1.msra.mxu0 %v62
    %64 = vmatprep.subr.mxu0 0.0
    %v65 = vand.u32 %v25, 4294901760
    %66 = vmatpush1.msra.mxu0 %v65
    %67 = vmatprep.subr.mxu0 0.0
    %v68 = vand.u32 %v24, 4294901760
    %69 = vmatpush1.msra.mxu0 %v68
    %70 = vmatprep.subr.mxu0 0.0
    %v71 = vand.u32 %v23, 4294901760
    %72 = vmatpush1.msra.mxu0 %v71
    %73 = vmatprep.subr.mxu0 0.0
    %v74 = vand.u32 %v22, 4294901760
    %75 = vmatpush1.msra.mxu0 %v74
    %76 = vmatprep.subr.mxu0 0.0
    %v77 = vand.u32 %v21, 4294901760
    %78 = vmatpush1.msra.mxu0 %v77
    %79 = vmatprep.subr.mxu0 0.0
    %v80 = vand.u32 %v20, 4294901760
    %81 = vmatpush1.msra.mxu0 %v80
    %82 = vmatprep.subr.mxu0 0.0
    %v83 = vand.u32 %v19, 4294901760
    %84 = vmatpush1.msra.mxu0 %v83
    %85 = vmatprep.subr.mxu0 0.0
    %v86 = vand.u32 %v18, 4294901760
    %87 = vmatpush1.msra.mxu0 %v86
    %88 = vmatprep.subr.mxu0 0.0
    %v89 = vand.u32 %v17, 4294901760
    %90 = vmatpush1.msra.mxu0 %v89
    %91 = vmatprep.subr.mxu0 0.0
    %v92 = vand.u32 %v16, 4294901760
    %93 = vmatpush1.msra.mxu0 %v92
    %94 = vmatprep.subr.mxu0 0.0
    %95 = vmatpush2.msra.mxu0 0.0
    %96 = vmatprep.subr.mxu0 0.0
    %97 = vmatpush2.msra.mxu0 0.0
    %98 = vmatprep.subr.mxu0 0.0
    %99 = vmatpush2.msra.mxu0 0.0
    %100 = vmatprep.subr.mxu0 0.0
    %101 = vmatpush2.msra.mxu0 0.0
    %102 = vmatprep.subr.mxu0 0.0
    %103 = vmatpush2.msra.mxu0 0.0
    %104 = vmatprep.subr.mxu0 0.0
    %105 = vmatpush2.msra.mxu0 0.0
    %106 = vmatprep.subr.mxu0 0.0
    %107 = vmatpush2.msra.mxu0 0.0
    %108 = vmatprep.subr.mxu0 0.0
    %109 = vmatpush2.msra.mxu0 0.0
    %110 = vmatprep.subr.mxu0 0.0
    %111 = vmatpush2.msra.mxu0 0.0
    %112 = vmatprep.subr.mxu0 0.0
    %113 = vmatpush2.msra.mxu0 0.0
    %114 = vmatprep.subr.mxu0 0.0
    %115 = vmatpush2.msra.mxu0 0.0
    %116 = vmatprep.subr.mxu0 0.0
    %117 = vmatpush2.msra.mxu0 0.0
    %118 = vmatprep.subr.mxu0 0.0
    %119 = vmatpush2.msra.mxu0 0.0
    %120 = vmatprep.subr.mxu0 0.0
    %121 = vmatpush2.msra.mxu0 0.0
    %122 = vmatprep.subr.mxu0 0.0
    %123 = vmatpush2.msra.mxu0 0.0
    %124 = vmatprep.subr.mxu0 0.0
    %125 = vmatpush2.msra.mxu0 0.0
    %126 = vmatprep.mubr.f32.mxu0 0.0
    %v127 = vand.u32 %v44, 4294901760
    %v128 = vsub.f32 %v44, %v127
    %v129 = vand.u32 %v128, 4294901760
    %v130 = vsub.f32 %v128, %v129
    %v131 = vand.u32 %v130, 4294901760
    %132 = vmatmul.mubr.f32.gmra.mxu0 %v131
    %v133 = vpop.f32.mrf.mxu0
    %v134 = vadd.f32 0.0, %v133
    %v135 = vpop.f32.mrf.mxu0
    %136 = vmatprep.mubr.f32.mxu0 0.0
    %v137 = vand.u32 %v45, 4294901760
    %v138 = vsub.f32 %v45, %v137
    %v139 = vand.u32 %v138, 4294901760
    %v140 = vsub.f32 %v138, %v139
    %v141 = vand.u32 %v140, 4294901760
    %142 = vmatmul.mubr.f32.gmra.mxu0 %v141
    %v143 = vpop.f32.mrf.mxu0
    %v144 = vadd.f32 0.0, %v143
    %v145 = vpop.f32.mrf.mxu0
    %146 = vdwg.mxu0
    %147 = vmatprep.subr.mxu0 0.0
    %v148 = vand.u32 %v31, 4294901760
    %v149 = vsub.f32 %v31, %v148
    %v150 = vand.u32 %v149, 4294901760
    %v151 = vsub.f32 %v149, %v150
    %v152 = vand.u32 %v151, 4294901760
    %153 = vmatpush1.msra.mxu0 %v152
    %154 = vmatprep.subr.mxu0 0.0
    %v155 = vand.u32 %v30, 4294901760
    %v156 = vsub.f32 %v30, %v155
    %v157 = vand.u32 %v156, 4294901760
    %v158 = vsub.f32 %v156, %v157
    %v159 = vand.u32 %v158, 4294901760
    %160 = vmatpush1.msra.mxu0 %v159
    %161 = vmatprep.subr.mxu0 0.0
    %v162 = vand.u32 %v29, 4294901760
    %v163 = vsub.f32 %v29, %v162
    %v164 = vand.u32 %v163, 4294901760
    %v165 = vsub.f32 %v163, %v164
    %v166 = vand.u32 %v165, 4294901760
    %167 = vmatpush1.msra.mxu0 %v166
    %168 = vmatprep.subr.mxu0 0.0
    %v169 = vand.u32 %v28, 4294901760
    %v170 = vsub.f32 %v28, %v169
    %v171 = vand.u32 %v170, 4294901760
    %v172 = vsub.f32 %v170, %v171
    %v173 = vand.u32 %v172, 4294901760
    %174 = vmatpush1.msra.mxu0 %v173
    %175 = vmatprep.subr.mxu0 0.0
    %v176 = vand.u32 %v27, 4294901760
    %v177 = vsub.f32 %v27, %v176
    %v178 = vand.u32 %v177, 4294901760
    %v179 = vsub.f32 %v177, %v178
    %v180 = vand.u32 %v179, 4294901760
    %181 = vmatpush1.msra.mxu0 %v180
    %182 = vmatprep.subr.mxu0 0.0
    %v183 = vand.u32 %v26, 4294901760
    %v184 = vsub.f32 %v26, %v183
    %v185 = vand.u32 %v184, 4294901760
    %v186 = vsub.f32 %v184, %v185
    %v187 = vand.u32 %v186, 4294901760
    %188 = vmatpush1.msra.mxu0 %v187
    %189 = vmatprep.subr.mxu0 0.0
    %v190 = vand.u32 %v25, 4294901760
    %v191 = vsub.f32 %v25, %v190
    %v192 = vand.u32 %v191, 4294901760
    %v193 = vsub.f32 %v191, %v192
    %v194 = vand.u32 %v193, 4294901760
    %195 = vmatpush1.msra.mxu0 %v194
    %196 = vmatprep.subr.mxu0 0.0
    %v197 = vand.u32 %v24, 4294901760
    %v198 = vsub.f32 %v24, %v197
    %v199 = vand.u32 %v198, 4294901760
    %v200 = vsub.f32 %v198, %v199
    %v201 = vand.u32 %v200, 4294901760
    %202 = vmatpush1.msra.mxu0 %v201
    %203 = vmatprep.subr.mxu0 0.0
    %v204 = vand.u32 %v23, 4294901760
    %v205 = vsub.f32 %v23, %v204
    %v206 = vand.u32 %v205, 4294901760
    %v207 = vsub.f32 %v205, %v206
    %v208 = vand.u32 %v207, 4294901760
    %209 = vmatpush1.msra.mxu0 %v208
    %210 = vmatprep.subr.mxu0 0.0
    %v211 = vand.u32 %v22, 4294901760
    %v212 = vsub.f32 %v22, %v211
    %v213 = vand.u32 %v212, 4294901760
    %v214 = vsub.f32 %v212, %v213
    %v215 = vand.u32 %v214, 4294901760
    %216 = vmatpush1.msra.mxu0 %v215
    %217 = vmatprep.subr.mxu0 0.0
    %v218 = vand.u32 %v21, 4294901760
    %v219 = vsub.f32 %v21, %v218
    %v220 = vand.u32 %v219, 4294901760
    %v221 = vsub.f32 %v219, %v220
    %v222 = vand.u32 %v221, 4294901760
    %223 = vmatpush1.msra.mxu0 %v222
    %224 = vmatprep.subr.mxu0 0.0
    %v225 = vand.u32 %v20, 4294901760
    %v226 = vsub.f32 %v20, %v225
    %v227 = vand.u32 %v226, 4294901760
    %v228 = vsub.f32 %v226, %v227
    %v229 = vand.u32 %v228, 4294901760
    %230 = vmatpush1.msra.mxu0 %v229
    %231 = vmatprep.subr.mxu0 0.0
    %v232 = vand.u32 %v19, 4294901760
    %v233 = vsub.f32 %v19, %v232
    %v234 = vand.u32 %v233, 4294901760
    %v235 = vsub.f32 %v233, %v234
    %v236 = vand.u32 %v235, 4294901760
    %237 = vmatpush1.msra.mxu0 %v236
    %238 = vmatprep.subr.mxu0 0.0
    %v239 = vand.u32 %v18, 4294901760
    %v240 = vsub.f32 %v18, %v239
    %v241 = vand.u32 %v240, 4294901760
    %v242 = vsub.f32 %v240, %v241
    %v243 = vand.u32 %v242, 4294901760
    %244 = vmatpush1.msra.mxu0 %v243
    %245 = vmatprep.subr.mxu0 0.0
    %v246 = vand.u32 %v17, 4294901760
    %v247 = vsub.f32 %v17, %v246
    %v248 = vand.u32 %v247, 4294901760
    %v249 = vsub.f32 %v247, %v248
    %v250 = vand.u32 %v249, 4294901760
    %251 = vmatpush1.msra.mxu0 %v250
    %252 = vmatprep.subr.mxu0 0.0
    %v253 = vand.u32 %v16, 4294901760
    %v254 = vsub.f32 %v16, %v253
    %v255 = vand.u32 %v254, 4294901760
    %v256 = vsub.f32 %v254, %v255
    %v257 = vand.u32 %v256, 4294901760
    %258 = vmatpush1.msra.mxu0 %v257
    %259 = vmatprep.subr.mxu0 0.0
    %260 = vmatpush2.msra.mxu0 0.0
    %261 = vmatprep.subr.mxu0 0.0
    %262 = vmatpush2.msra.mxu0 0.0
    %263 = vmatprep.subr.mxu0 0.0
    %264 = vmatpush2.msra.mxu0 0.0
    %265 = vmatprep.subr.mxu0 0.0
    %266 = vmatpush2.msra.mxu0 0.0
    %267 = vmatprep.subr.mxu0 0.0
    %268 = vmatpush2.msra.mxu0 0.0
    %269 = vmatprep.subr.mxu0 0.0
    %270 = vmatpush2.msra.mxu0 0.0
    %271 = vmatprep.subr.mxu0 0.0
    %272 = vmatpush2.msra.mxu0 0.0
    %273 = vmatprep.subr.mxu0 0.0
    %274 = vmatpush2.msra.mxu0 0.0
    %275 = vmatprep.subr.mxu0 0.0
    %276 = vmatpush2.msra.mxu0 0.0
    %277 = vmatprep.subr.mxu0 0.0
    %278 = vmatpush2.msra.mxu0 0.0
    %279 = vmatprep.subr.mxu0 0.0
    %280 = vmatpush2.msra.mxu0 0.0
    %281 = vmatprep.subr.mxu0 0.0
    %282 = vmatpush2.msra.mxu0 0.0
    %283 = vmatprep.subr.mxu0 0.0
    %284 = vmatpush2.msra.mxu0 0.0
    %285 = vmatprep.subr.mxu0 0.0
    %286 = vmatpush2.msra.mxu0 0.0
    %287 = vmatprep.subr.mxu0 0.0
    %288 = vmatpush2.msra.mxu0 0.0
    %289 = vmatprep.subr.mxu0 0.0
    %290 = vmatpush2.msra.mxu0 0.0
    %291 = vmatprep.mubr.f32.mxu0 0.0
    %v292 = vand.u32 %v44, 4294901760
    %293 = vmatmul.mubr.f32.gmra.mxu0 %v292
    %v294 = vpop.f32.mrf.mxu0
    %v295 = vadd.f32 %v134, %v294
    %v296 = vpop.f32.mrf.mxu0
    %297 = vmatprep.mubr.f32.mxu0 0.0
    %v298 = vand.u32 %v45, 4294901760
    %299 = vmatmul.mubr.f32.gmra.mxu0 %v298
    %v300 = vpop.f32.mrf.mxu0
    %v301 = vadd.f32 %v144, %v300
    %v302 = vpop.f32.mrf.mxu0
    %303 = vdwg.mxu0
    %304 = vmatprep.subr.mxu0 0.0
    %v305 = vand.u32 %v31, 4294901760
    %v306 = vsub.f32 %v31, %v305
    %307 = vmatpush1.msra.mxu0 %v306
    %308 = vmatprep.subr.mxu0 0.0
    %v309 = vand.u32 %v30, 4294901760
    %v310 = vsub.f32 %v30, %v309
    %311 = vmatpush1.msra.mxu0 %v310
    %312 = vmatprep.subr.mxu0 0.0
    %v313 = vand.u32 %v29, 4294901760
    %v314 = vsub.f32 %v29, %v313
    %315 = vmatpush1.msra.mxu0 %v314
    %316 = vmatprep.subr.mxu0 0.0
    %v317 = vand.u32 %v28, 4294901760
    %v318 = vsub.f32 %v28, %v317
    %319 = vmatpush1.msra.mxu0 %v318
    %320 = vmatprep.subr.mxu0 0.0
    %v321 = vand.u32 %v27, 4294901760
    %v322 = vsub.f32 %v27, %v321
    %323 = vmatpush1.msra.mxu0 %v322
    %324 = vmatprep.subr.mxu0 0.0
    %v325 = vand.u32 %v26, 4294901760
    %v326 = vsub.f32 %v26, %v325
    %327 = vmatpush1.msra.mxu0 %v326
    %328 = vmatprep.subr.mxu0 0.0
    %v329 = vand.u32 %v25, 4294901760
    %v330 = vsub.f32 %v25, %v329
    %331 = vmatpush1.msra.mxu0 %v330
    %332 = vmatprep.subr.mxu0 0.0
    %v333 = vand.u32 %v24, 4294901760
    %v334 = vsub.f32 %v24, %v333
    %335 = vmatpush1.msra.mxu0 %v334
    %336 = vmatprep.subr.mxu0 0.0
    %v337 = vand.u32 %v23, 4294901760
    %v338 = vsub.f32 %v23, %v337
    %339 = vmatpush1.msra.mxu0 %v338
    %340 = vmatprep.subr.mxu0 0.0
    %v341 = vand.u32 %v22, 4294901760
    %v342 = vsub.f32 %v22, %v341
    %343 = vmatpush1.msra.mxu0 %v342
    %344 = vmatprep.subr.mxu0 0.0
    %v345 = vand.u32 %v21, 4294901760
    %v346 = vsub.f32 %v21, %v345
    %347 = vmatpush1.msra.mxu0 %v346
    %348 = vmatprep.subr.mxu0 0.0
    %v349 = vand.u32 %v20, 4294901760
    %v350 = vsub.f32 %v20, %v349
    %351 = vmatpush1.msra.mxu0 %v350
    %352 = vmatprep.subr.mxu0 0.0
    %v353 = vand.u32 %v19, 4294901760
    %v354 = vsub.f32 %v19, %v353
    %355 = vmatpush1.msra.mxu0 %v354
    %356 = vmatprep.subr.mxu0 0.0
    %v357 = vand.u32 %v18, 4294901760
    %v358 = vsub.f32 %v18, %v357
    %359 = vmatpush1.msra.mxu0 %v358
    %360 = vmatprep.subr.mxu0 0.0
    %v361 = vand.u32 %v17, 4294901760
    %v362 = vsub.f32 %v17, %v361
    %363 = vmatpush1.msra.mxu0 %v362
    %364 = vmatprep.subr.mxu0 0.0
    %v365 = vand.u32 %v16, 4294901760
    %v366 = vsub.f32 %v16, %v365
    %367 = vmatpush1.msra.mxu0 %v366
    %368 = vmatprep.subr.mxu0 0.0
    %369 = vmatpush2.msra.mxu0 0.0
    %370 = vmatprep.subr.mxu0 0.0
    %371 = vmatpush2.msra.mxu0 0.0
    %372 = vmatprep.subr.mxu0 0.0
    %373 = vmatpush2.msra.mxu0 0.0
    %374 = vmatprep.subr.mxu0 0.0
    %375 = vmatpush2.msra.mxu0 0.0
    %376 = vmatprep.subr.mxu0 0.0
    %377 = vmatpush2.msra.mxu0 0.0
    %378 = vmatprep.subr.mxu0 0.0
    %379 = vmatpush2.msra.mxu0 0.0
    %380 = vmatprep.subr.mxu0 0.0
    %381 = vmatpush2.msra.mxu0 0.0
    %382 = vmatprep.subr.mxu0 0.0
    %383 = vmatpush2.msra.mxu0 0.0
    %384 = vmatprep.subr.mxu0 0.0
    %385 = vmatpush2.msra.mxu0 0.0
    %386 = vmatprep.subr.mxu0 0.0
    %387 = vmatpush2.msra.mxu0 0.0
    %388 = vmatprep.subr.mxu0 0.0
    %389 = vmatpush2.msra.mxu0 0.0
    %390 = vmatprep.subr.mxu0 0.0
    %391 = vmatpush2.msra.mxu0 0.0
    %392 = vmatprep.subr.mxu0 0.0
    %393 = vmatpush2.msra.mxu0 0.0
    %394 = vmatprep.subr.mxu0 0.0
    %395 = vmatpush2.msra.mxu0 0.0
    %396 = vmatprep.subr.mxu0 0.0
    %397 = vmatpush2.msra.mxu0 0.0
    %398 = vmatprep.subr.mxu0 0.0
    %399 = vmatpush2.msra.mxu0 0.0
    %400 = vmatprep.mubr.f32.mxu0 0.0
    %v401 = vand.u32 %v44, 4294901760
    %v402 = vsub.f32 %v44, %v401
    %403 = vmatmul.mubr.f32.gmra.mxu0 %v402
    %v404 = vpop.f32.mrf.mxu0
    %v405 = vadd.f32 %v295, %v404
    %v406 = vpop.f32.mrf.mxu0
    %407 = vmatprep.mubr.f32.mxu0 0.0
    %v408 = vand.u32 %v45, 4294901760
    %v409 = vsub.f32 %v45, %v408
    %410 = vmatmul.mubr.f32.gmra.mxu0 %v409
    %v411 = vpop.f32.mrf.mxu0
    %v412 = vadd.f32 %v301, %v411
    %v413 = vpop.f32.mrf.mxu0
    %414 = vdwg.mxu0
    %415 = vmatprep.subr.mxu0 0.0
    %v416 = vand.u32 %v31, 4294901760
    %417 = vmatpush1.msra.mxu0 %v416
    %418 = vmatprep.subr.mxu0 0.0
    %v419 = vand.u32 %v30, 4294901760
    %420 = vmatpush1.msra.mxu0 %v419
    %421 = vmatprep.subr.mxu0 0.0
    %v422 = vand.u32 %v29, 4294901760
    %423 = vmatpush1.msra.mxu0 %v422
    %424 = vmatprep.subr.mxu0 0.0
    %v425 = vand.u32 %v28, 4294901760
    %426 = vmatpush1.msra.mxu0 %v425
    %427 = vmatprep.subr.mxu0 0.0
    %v428 = vand.u32 %v27, 4294901760
    %429 = vmatpush1.msra.mxu0 %v428
    %430 = vmatprep.subr.mxu0 0.0
    %v431 = vand.u32 %v26, 4294901760
    %432 = vmatpush1.msra.mxu0 %v431
    %433 = vmatprep.subr.mxu0 0.0
    %v434 = vand.u32 %v25, 4294901760
    %435 = vmatpush1.msra.mxu0 %v434
    %436 = vmatprep.subr.mxu0 0.0
    %v437 = vand.u32 %v24, 4294901760
    %438 = vmatpush1.msra.mxu0 %v437
    %439 = vmatprep.subr.mxu0 0.0
    %v440 = vand.u32 %v23, 4294901760
    %441 = vmatpush1.msra.mxu0 %v440
    %442 = vmatprep.subr.mxu0 0.0
    %v443 = vand.u32 %v22, 4294901760
    %444 = vmatpush1.msra.mxu0 %v443
    %445 = vmatprep.subr.mxu0 0.0
    %v446 = vand.u32 %v21, 4294901760
    %447 = vmatpush1.msra.mxu0 %v446
    %448 = vmatprep.subr.mxu0 0.0
    %v449 = vand.u32 %v20, 4294901760
    %450 = vmatpush1.msra.mxu0 %v449
    %451 = vmatprep.subr.mxu0 0.0
    %v452 = vand.u32 %v19, 4294901760
    %453 = vmatpush1.msra.mxu0 %v452
    %454 = vmatprep.subr.mxu0 0.0
    %v455 = vand.u32 %v18, 4294901760
    %456 = vmatpush1.msra.mxu0 %v455
    %457 = vmatprep.subr.mxu0 0.0
    %v458 = vand.u32 %v17, 4294901760
    %459 = vmatpush1.msra.mxu0 %v458
    %460 = vmatprep.subr.mxu0 0.0
    %v461 = vand.u32 %v16, 4294901760
    %462 = vmatpush1.msra.mxu0 %v461
    %463 = vmatprep.subr.mxu0 0.0
    %464 = vmatpush2.msra.mxu0 0.0
    %465 = vmatprep.subr.mxu0 0.0
    %466 = vmatpush2.msra.mxu0 0.0
    %467 = vmatprep.subr.mxu0 0.0
    %468 = vmatpush2.msra.mxu0 0.0
    %469 = vmatprep.subr.mxu0 0.0
    %470 = vmatpush2.msra.mxu0 0.0
    %471 = vmatprep.subr.mxu0 0.0
    %472 = vmatpush2.msra.mxu0 0.0
    %473 = vmatprep.subr.mxu0 0.0
    %474 = vmatpush2.msra.mxu0 0.0
    %475 = vmatprep.subr.mxu0 0.0
    %476 = vmatpush2.msra.mxu0 0.0
    %477 = vmatprep.subr.mxu0 0.0
    %478 = vmatpush2.msra.mxu0 0.0
    %479 = vmatprep.subr.mxu0 0.0
    %480 = vmatpush2.msra.mxu0 0.0
    %481 = vmatprep.subr.mxu0 0.0
    %482 = vmatpush2.msra.mxu0 0.0
    %483 = vmatprep.subr.mxu0 0.0
    %484 = vmatpush2.msra.mxu0 0.0
    %485 = vmatprep.subr.mxu0 0.0
    %486 = vmatpush2.msra.mxu0 0.0
    %487 = vmatprep.subr.mxu0 0.0
    %488 = vmatpush2.msra.mxu0 0.0
    %489 = vmatprep.subr.mxu0 0.0
    %490 = vmatpush2.msra.mxu0 0.0
    %491 = vmatprep.subr.mxu0 0.0
    %492 = vmatpush2.msra.mxu0 0.0
    %493 = vmatprep.subr.mxu0 0.0
    %494 = vmatpush2.msra.mxu0 0.0
    %495 = vmatprep.mubr.f32.mxu0 0.0
    %v496 = vand.u32 %v44, 4294901760
    %v497 = vsub.f32 %v44, %v496
    %v498 = vand.u32 %v497, 4294901760
    %499 = vmatmul.mubr.f32.gmra.mxu0 %v498
    %v500 = vpop.f32.mrf.mxu0
    %v501 = vadd.f32 %v405, %v500
    %v502 = vpop.f32.mrf.mxu0
    %503 = vmatprep.mubr.f32.mxu0 0.0
    %v504 = vand.u32 %v45, 4294901760
    %v505 = vsub.f32 %v45, %v504
    %v506 = vand.u32 %v505, 4294901760
    %507 = vmatmul.mubr.f32.gmra.mxu0 %v506
    %v508 = vpop.f32.mrf.mxu0
    %v509 = vadd.f32 %v412, %v508
    %v510 = vpop.f32.mrf.mxu0
    %511 = vdwg.mxu0
    %512 = vmatprep.subr.mxu0 0.0
    %v513 = vand.u32 %v31, 4294901760
    %v514 = vsub.f32 %v31, %v513
    %v515 = vand.u32 %v514, 4294901760
    %516 = vmatpush1.msra.mxu0 %v515
    %517 = vmatprep.subr.mxu0 0.0
    %v518 = vand.u32 %v30, 4294901760
    %v519 = vsub.f32 %v30, %v518
    %v520 = vand.u32 %v519, 4294901760
    %521 = vmatpush1.msra.mxu0 %v520
    %522 = vmatprep.subr.mxu0 0.0
    %v523 = vand.u32 %v29, 4294901760
    %v524 = vsub.f32 %v29, %v523
    %v525 = vand.u32 %v524, 4294901760
    %526 = vmatpush1.msra.mxu0 %v525
    %527 = vmatprep.subr.mxu0 0.0
    %v528 = vand.u32 %v28, 4294901760
    %v529 = vsub.f32 %v28, %v528
    %v530 = vand.u32 %v529, 4294901760
    %531 = vmatpush1.msra.mxu0 %v530
    %532 = vmatprep.subr.mxu0 0.0
    %v533 = vand.u32 %v27, 4294901760
    %v534 = vsub.f32 %v27, %v533
    %v535 = vand.u32 %v534, 4294901760
    %536 = vmatpush1.msra.mxu0 %v535
    %537 = vmatprep.subr.mxu0 0.0
    %v538 = vand.u32 %v26, 4294901760
    %v539 = vsub.f32 %v26, %v538
    %v540 = vand.u32 %v539, 4294901760
    %541 = vmatpush1.msra.mxu0 %v540
    %542 = vmatprep.subr.mxu0 0.0
    %v543 = vand.u32 %v25, 4294901760
    %v544 = vsub.f32 %v25, %v543
    %v545 = vand.u32 %v544, 4294901760
    %546 = vmatpush1.msra.mxu0 %v545
    %547 = vmatprep.subr.mxu0 0.0
    %v548 = vand.u32 %v24, 4294901760
    %v549 = vsub.f32 %v24, %v548
    %v550 = vand.u32 %v549, 4294901760
    %551 = vmatpush1.msra.mxu0 %v550
    %552 = vmatprep.subr.mxu0 0.0
    %v553 = vand.u32 %v23, 4294901760
    %v554 = vsub.f32 %v23, %v553
    %v555 = vand.u32 %v554, 4294901760
    %556 = vmatpush1.msra.mxu0 %v555
    %557 = vmatprep.subr.mxu0 0.0
    %v558 = vand.u32 %v22, 4294901760
    %v559 = vsub.f32 %v22, %v558
    %v560 = vand.u32 %v559, 4294901760
    %561 = vmatpush1.msra.mxu0 %v560
    %562 = vmatprep.subr.mxu0 0.0
    %v563 = vand.u32 %v21, 4294901760
    %v564 = vsub.f32 %v21, %v563
    %v565 = vand.u32 %v564, 4294901760
    %566 = vmatpush1.msra.mxu0 %v565
    %567 = vmatprep.subr.mxu0 0.0
    %v568 = vand.u32 %v20, 4294901760
    %v569 = vsub.f32 %v20, %v568
    %v570 = vand.u32 %v569, 4294901760
    %571 = vmatpush1.msra.mxu0 %v570
    %572 = vmatprep.subr.mxu0 0.0
    %v573 = vand.u32 %v19, 4294901760
    %v574 = vsub.f32 %v19, %v573
    %v575 = vand.u32 %v574, 4294901760
    %576 = vmatpush1.msra.mxu0 %v575
    %577 = vmatprep.subr.mxu0 0.0
    %v578 = vand.u32 %v18, 4294901760
    %v579 = vsub.f32 %v18, %v578
    %v580 = vand.u32 %v579, 4294901760
    %581 = vmatpush1.msra.mxu0 %v580
    %582 = vmatprep.subr.mxu0 0.0
    %v583 = vand.u32 %v17, 4294901760
    %v584 = vsub.f32 %v17, %v583
    %v585 = vand.u32 %v584, 4294901760
    %586 = vmatpush1.msra.mxu0 %v585
    %587 = vmatprep.subr.mxu0 0.0
    %v588 = vand.u32 %v16, 4294901760
    %v589 = vsub.f32 %v16, %v588
    %v590 = vand.u32 %v589, 4294901760
    %591 = vmatpush1.msra.mxu0 %v590
    %592 = vmatprep.subr.mxu0 0.0
    %593 = vmatpush2.msra.mxu0 0.0
    %594 = vmatprep.subr.mxu0 0.0
    %595 = vmatpush2.msra.mxu0 0.0
    %596 = vmatprep.subr.mxu0 0.0
    %597 = vmatpush2.msra.mxu0 0.0
    %598 = vmatprep.subr.mxu0 0.0
    %599 = vmatpush2.msra.mxu0 0.0
    %600 = vmatprep.subr.mxu0 0.0
    %601 = vmatpush2.msra.mxu0 0.0
    %602 = vmatprep.subr.mxu0 0.0
    %603 = vmatpush2.msra.mxu0 0.0
    %604 = vmatprep.subr.mxu0 0.0
    %605 = vmatpush2.msra.mxu0 0.0
    %606 = vmatprep.subr.mxu0 0.0
    %607 = vmatpush2.msra.mxu0 0.0
    %608 = vmatprep.subr.mxu0 0.0
    %609 = vmatpush2.msra.mxu0 0.0
    %610 = vmatprep.subr.mxu0 0.0
    %611 = vmatpush2.msra.mxu0 0.0
    %612 = vmatprep.subr.mxu0 0.0
    %613 = vmatpush2.msra.mxu0 0.0
    %614 = vmatprep.subr.mxu0 0.0
    %615 = vmatpush2.msra.mxu0 0.0
    %616 = vmatprep.subr.mxu0 0.0
    %617 = vmatpush2.msra.mxu0 0.0
    %618 = vmatprep.subr.mxu0 0.0
    %619 = vmatpush2.msra.mxu0 0.0
    %620 = vmatprep.subr.mxu0 0.0
    %621 = vmatpush2.msra.mxu0 0.0
    %622 = vmatprep.subr.mxu0 0.0
    %623 = vmatpush2.msra.mxu0 0.0
    %624 = vmatprep.mubr.f32.mxu0 0.0
    %v625 = vand.u32 %v44, 4294901760
    %626 = vmatmul.mubr.f32.gmra.mxu0 %v625
    %v627 = vpop.f32.mrf.mxu0
    %v628 = vadd.f32 %v501, %v627
    %v629 = vpop.f32.mrf.mxu0
    %630 = vmatprep.mubr.f32.mxu0 0.0
    %v631 = vand.u32 %v45, 4294901760
    %632 = vmatmul.mubr.f32.gmra.mxu0 %v631
    %v633 = vpop.f32.mrf.mxu0
    %v634 = vadd.f32 %v509, %v633
    %v635 = vpop.f32.mrf.mxu0
    %636 = vdwg.mxu0
    %637 = vmatprep.subr.mxu0 0.0
    %v638 = vand.u32 %v31, 4294901760
    %639 = vmatpush1.msra.mxu0 %v638
    %640 = vmatprep.subr.mxu0 0.0
    %v641 = vand.u32 %v30, 4294901760
    %642 = vmatpush1.msra.mxu0 %v641
    %643 = vmatprep.subr.mxu0 0.0
    %v644 = vand.u32 %v29, 4294901760
    %645 = vmatpush1.msra.mxu0 %v644
    %646 = vmatprep.subr.mxu0 0.0
    %v647 = vand.u32 %v28, 4294901760
    %648 = vmatpush1.msra.mxu0 %v647
    %649 = vmatprep.subr.mxu0 0.0
    %v650 = vand.u32 %v27, 4294901760
    %651 = vmatpush1.msra.mxu0 %v650
    %652 = vmatprep.subr.mxu0 0.0
    %v653 = vand.u32 %v26, 4294901760
    %654 = vmatpush1.msra.mxu0 %v653
    %655 = vmatprep.subr.mxu0 0.0
    %v656 = vand.u32 %v25, 4294901760
    %657 = vmatpush1.msra.mxu0 %v656
    %658 = vmatprep.subr.mxu0 0.0
    %v659 = vand.u32 %v24, 4294901760
    %660 = vmatpush1.msra.mxu0 %v659
    %661 = vmatprep.subr.mxu0 0.0
    %v662 = vand.u32 %v23, 4294901760
    %663 = vmatpush1.msra.mxu0 %v662
    %664 = vmatprep.subr.mxu0 0.0
    %v665 = vand.u32 %v22, 4294901760
    %666 = vmatpush1.msra.mxu0 %v665
    %667 = vmatprep.subr.mxu0 0.0
    %v668 = vand.u32 %v21, 4294901760
    %669 = vmatpush1.msra.mxu0 %v668
    %670 = vmatprep.subr.mxu0 0.0
    %v671 = vand.u32 %v20, 4294901760
    %672 = vmatpush1.msra.mxu0 %v671
    %673 = vmatprep.subr.mxu0 0.0
    %v674 = vand.u32 %v19, 4294901760
    %675 = vmatpush1.msra.mxu0 %v674
    %676 = vmatprep.subr.mxu0 0.0
    %v677 = vand.u32 %v18, 4294901760
    %678 = vmatpush1.msra.mxu0 %v677
    %679 = vmatprep.subr.mxu0 0.0
    %v680 = vand.u32 %v17, 4294901760
    %681 = vmatpush1.msra.mxu0 %v680
    %682 = vmatprep.subr.mxu0 0.0
    %v683 = vand.u32 %v16, 4294901760
    %684 = vmatpush1.msra.mxu0 %v683
    %685 = vmatprep.subr.mxu0 0.0
    %686 = vmatpush2.msra.mxu0 0.0
    %687 = vmatprep.subr.mxu0 0.0
    %688 = vmatpush2.msra.mxu0 0.0
    %689 = vmatprep.subr.mxu0 0.0
    %690 = vmatpush2.msra.mxu0 0.0
    %691 = vmatprep.subr.mxu0 0.0
    %692 = vmatpush2.msra.mxu0 0.0
    %693 = vmatprep.subr.mxu0 0.0
    %694 = vmatpush2.msra.mxu0 0.0
    %695 = vmatprep.subr.mxu0 0.0
    %696 = vmatpush2.msra.mxu0 0.0
    %697 = vmatprep.subr.mxu0 0.0
    %698 = vmatpush2.msra.mxu0 0.0
    %699 = vmatprep.subr.mxu0 0.0
    %700 = vmatpush2.msra.mxu0 0.0
    %701 = vmatprep.subr.mxu0 0.0
    %702 = vmatpush2.msra.mxu0 0.0
    %703 = vmatprep.subr.mxu0 0.0
    %704 = vmatpush2.msra.mxu0 0.0
    %705 = vmatprep.subr.mxu0 0.0
    %706 = vmatpush2.msra.mxu0 0.0
    %707 = vmatprep.subr.mxu0 0.0
    %708 = vmatpush2.msra.mxu0 0.0
    %709 = vmatprep.subr.mxu0 0.0
    %710 = vmatpush2.msra.mxu0 0.0
    %711 = vmatprep.subr.mxu0 0.0
    %712 = vmatpush2.msra.mxu0 0.0
    %713 = vmatprep.subr.mxu0 0.0
    %714 = vmatpush2.msra.mxu0 0.0
    %715 = vmatprep.subr.mxu0 0.0
    %716 = vmatpush2.msra.mxu0 0.0
    %717 = vmatprep.mubr.f32.mxu0 0.0
    %v718 = vand.u32 %v44, 4294901760
    %719 = vmatmul.mubr.f32.gmra.mxu0 %v718
    %v720 = vpop.f32.mrf.mxu0
    %v721 = vadd.f32 %v628, %v720
    %v722 = vpop.f32.mrf.mxu0
    %723 = vmatprep.mubr.f32.mxu0 0.0
    %v724 = vand.u32 %v45, 4294901760
    %725 = vmatmul.mubr.f32.gmra.mxu0 %v724
    %v726 = vpop.f32.mrf.mxu0
    %v727 = vadd.f32 %v634, %v726
    %v728 = vpop.f32.mrf.mxu0
    %729 = vdwg.mxu0
    %vm730 = vcmask 531456
    %731 = vst.msk [vmem:[#allocation2] sm:$0xff] %vm730, %v721
    %732 = vst.msk [vmem:[#allocation2 + $0x8] sm:$0xff] %vm730, %v727
    %v733 = vsel %vm730, %v721, -inf
    %734 = vmax.xlane.f32.xlu0 %v733
    %v735 = vpop.xlane.xlu0 %734
    %v736 = vsel %vm730, %v727, -inf
    %737 = vmax.xlane.f32.xlu0 %v736
    %v738 = vpop.xlane.xlu0 %737
    %v739 = vsub.f32 %v721, %v735
    %v740 = vsub.f32 %v727, %v738
    %v741 = vmul.f32 %v739, 1.442695
    %v742 = vpow.pop %v741
    %v743 = vmul.f32 %v740, 1.442695
    %v744 = vpow.pop %v743
    %v745 = vsel %vm730, %v742, 0.0
    %746 = vadd.xlane.f32.xlu0 %v745
    %v747 = vpop.xlane.xlu0 %746
    %v748 = vsel %vm730, %v744, 0.0
    %749 = vadd.xlane.f32.xlu0 %v748
    %v750 = vpop.xlane.xlu0 %749
    %v751 = vlog2.pop %v747
    %v752 = vmul.f32 %v751, 0.6931472
    %v753 = vlog2.pop %v750
    %v754 = vmul.f32 %v753, 0.6931472
    %v755 = vadd.f32 %v735, %v752
    %v756 = vadd.f32 %v738, %v754
    %757 = vset.pattern.permute.xlu0 1
    %758 = vperm.xlu0 %757, %v14
    %v759 = vpop.permute.xlu0 %758
    %760 = vset.pattern.permute.xlu0 1
    %761 = vperm.xlu0 %760, %v15
    %v762 = vpop.permute.xlu0 %761
    %vm763 = vcmp.eq.s32.totalorder %v33, %v759
    %vm764 = vcmp.eq.s32.totalorder %v33, %v762
    %v765 = vsel %vm763, %v721, 0.0
    %v766 = vsel %vm764, %v727, 0.0
    %v767 = vsel %vm730, %v765, 0.0
    %768 = vadd.xlane.f32.xlu0 %v767
    %v769 = vpop.xlane.xlu0 %768
    %v770 = vsel %vm730, %v766, 0.0
    %771 = vadd.xlane.f32.xlu0 %v770
    %v772 = vpop.xlane.xlu0 %771
    %v773 = vlaneseq
    %v774 = vshrl.u32 %v773, 7
    %v775 = vadd.s32 %v774, 8
    %s776 = smul.u32 0, 16
    %v777 = vstv %s776
    %v778 = vadd.s32 %v777, %v774
    %v779 = vadd.s32 %v777, %v775
    %vm780 = vcmp.lt.s32.totalorder %v778, 16
    %vm781 = vcmp.lt.s32.totalorder %v779, 16
    %v782 = vsub.f32 %v755, %v769
    %v783 = vsub.f32 %v756, %v772
    %v784 = vsel %vm780, %v782, 0.0
    %v785 = vsel %vm781, %v783, 0.0
    %vm786 = vcmask 7168
    %787 = vst.msk [vmem:[%s3] sm:$0xff] %vm786, %v784
    %788 = vst.msk [vmem:[%s3 + $0x8] sm:$0xff] %vm786, %v785
    // Predicated region
    $region10: #{tpu_custom_call.1} parent=1 // pred_check
      _
    $region11: #{tpu_custom_call.1} parent=1 // pred_check_branch
      %790 = sbr.rel (0) target = $region13
    $region12: #{tpu_custom_call.1} parent=1 // pred_region
      %s792 = ssub.s32 256, 256
      %793 = vsyncadd [#allocation3], %s792
      %s794 = sshll.u32 [#allocation2], 4
      %s795 = int_to_ptr.vmem [resolvable:$true] %s794
      %800 = dma.vmem_to_hbm [thread:$0]  %s795, 256, %s2, [#allocation3], 128, 128, 8
    $region13: #{tpu_custom_call.1} parent=1 // pred_fallthru
      _
    // Predicated region
    $region14: #{tpu_custom_call.1} parent=1 // pred_check
      _
    $region15: #{tpu_custom_call.1} parent=1 // pred_check_branch
      %802 = sbr.rel (0) target = $region17
    $region16: #{tpu_custom_call.1} parent=1 // pred_region
      _
    $region17: #{tpu_custom_call.1} parent=1 // pred_fallthru
      _
    // Predicated region
    $region18: #{tpu_custom_call.1} parent=1 // pred_check
      _
    $region19: #{tpu_custom_call.1} parent=1 // pred_check_branch
      %804 = sbr.rel (0) target = $region21
    $region20: #{tpu_custom_call.1} parent=1 // pred_region
      %805 = dma.done [#allocation3], 256
    $region21: #{tpu_custom_call.1} parent=1 // pred_fallthru
      _
    // Predicated region
    $region22: #{tpu_custom_call.1} parent=1 // pred_check
      _
    $region23: #{tpu_custom_call.1} parent=1 // pred_check_branch
      %807 = sbr.rel (0) target = $region25
    $region24: #{tpu_custom_call.1} parent=1 // pred_region
      _
    $region25: #{tpu_custom_call.1} parent=1 // pred_fallthru
      _
    %808 = vsyncpa [#allocation3], 1

</llo_original>
